<compile_context>
chip_gen: v6e
topology: v6e:2x2x1
jax: 0.10.0
libtpu: 0.0.40
codegen_flags: <defaults>
</compile_context>

<pallas_src>
import functools

import jax
import jax.numpy as jnp
from jax.experimental import pallas as pl
from jax.experimental.pallas import tpu as pltpu


def _contrastive_kernel(anchor_t_ref, pos_t_ref, neg_ref, plab_ref, plab_all_ref,
                        tmf_ref, fc_all_ref, out_ref, pos_sc, m_sc, l_sc,
                        *, temp, eps):
    # anchor_t_ref / pos_t_ref : [D, tm]      neg_ref   : [mk, D]
    # plab_ref / tmf_ref       : [1, tm]      plab_all_ref / fc_all_ref : [mk, 1]
    # pos_sc / m_sc / l_sc     : [1, tm] VMEM scratch (persist across the M axis)
    k = pl.program_id(1)

    # Fold 1/temp into the anchor tile once (used by both the pos dot and the MXU RHS).
    a_s = anchor_t_ref[...] * (1.0 / temp)                             # f32 [D, tm]

    @pl.when(k == 0)
    def _init():
        # pos[t] = sum_d anchor[t,d]*pos_pair[t,d]/temp.  It is both the first entry
        # of the row max and an always-kept term of the masked exp-sum (the "ones"
        # column prepended to the masks in the torch reference).
        pos = jnp.sum(a_s * pos_t_ref[...], axis=0, keepdims=True)     # [1, tm]
        pos_sc[...] = pos
        m_sc[...] = pos
        l_sc[...] = jnp.ones(l_sc.shape, l_sc.dtype)                   # exp(pos - pos)

    # neg[m,t] = (neg_pair @ anchor.T)[m,t] / temp for this M block    (MXU)
    neg_lhs = neg_ref[...]                                             # [mk, D]
    rhs = a_s if neg_lhs.dtype == jnp.float32 else a_s.astype(neg_lhs.dtype)
    neg = jnp.dot(neg_lhs, rhs, preferred_element_type=jnp.float32)    # [mk, tm]

    # Online (flash) softmax update.  The reference row max is UNMASKED (includes all
    # negatives); only the exp-sum is masked: keep a negative iff its label differs AND
    # FC + FC_all <= thr  (written as FC_all <= thr - FC to save one [mk,tm] VPU op).
    m_prev = m_sc[...]
    m_new = jnp.maximum(m_prev, jnp.max(neg, axis=0, keepdims=True))   # [1, tm]
    valid = jnp.logical_and(plab_all_ref[...] != plab_ref[...],
                            fc_all_ref[...] <= tmf_ref[...])           # [mk, tm] bool
    p = jnp.where(valid, jnp.exp(neg - m_new), 0.0)                    # [mk, tm]
    l_sc[...] = l_sc[...] * jnp.exp(m_prev - m_new) + jnp.sum(p, axis=0, keepdims=True)
    m_sc[...] = m_new

    @pl.when(k == pl.num_programs(1) - 1)
    def _finalize():
        exp_pos = jnp.exp(pos_sc[...] - m_sc[...])                     # [1, tm]
        # torch: loss = -log( exp(pos - mx) / (exp_neg_sum + eps) + eps )
        out_ref[...] = -jnp.log(exp_pos / (l_sc[...] + eps) + eps)     # lane-dense store


def _vmem_limit_bytes():
    # Generation-aware scoped-VMEM limit: don't apply the v7x 64-MiB cap to chips
    # with 128 MiB of VMEM.
    try:
        cap = int(pltpu.get_tpu_info().vmem_capacity_bytes)
    except Exception:
        cap = 64 * 1024 * 1024
    if cap >= 96 * 1024 * 1024:                               # v5e / v6e (128 MiB physical)
        return 100 * 1024 * 1024
    return max(32 * 1024 * 1024, cap - 12 * 1024 * 1024)      # v7x: ~52 MiB of 64 MiB


def _pick_mk(M):
    # Rows of neg_pair per inner grid step: bounds the [mk, tm] live set (vreg-spill
    # relief) and keeps the per-step VMEM footprint O(mk) instead of O(M).
    if M <= 256:
        return M
    for cand in (256, 192, 128, 64, 32, 16, 8):
        if M % cand == 0:
            return cand
    return M          # M not a multiple of 8: fall back to no M blocking (still correct)


def _per_step_bytes(D, tm, mk):
    # anchorT/posT (double-buffered) + neg block (double-buffered)
    # + [mk, tm] intermediates / spill scratch + small rows/cols + scratch/out.
    return 4 * (2 * 2 * D * tm + 2 * mk * D + 6 * mk * tm + 4 * (mk + tm) + 4 * tm)


def _pick_tm(N, D, mk, budget):
    cands = [c for c in (512, 384, 256, 128) if c <= N and N % c == 0]
    if not cands:
        cands = [N]
    # Prefer >= 2 grid steps along N so both v7x TensorCores get work, then the largest
    # tile that fits the VMEM budget (bigger contiguous DMAs, fewer per-step overheads).
    prefer = [c for c in cands if N // c >= 2] or cands
    for c in prefer:
        if _per_step_bytes(D, c, mk) <= budget:
            return c
    return prefer[-1]


def contrastive_loss(anchor, pos_pair, neg_pair, pseudo_label, pseudo_label_all,
                     FC, FC_all, *, bdp_threshold, fdp_threshold,
                     temp=0.1, eps=1e-8, tm=None, mk=None, use_bf16_matmul=False):
    N, D = anchor.shape
    M = neg_pair.shape[0]
    assert N % 128 == 0, "N must be a multiple of 128"
    # TODO(synk): ragged last-tile path (pl.when masking) for N not a multiple of 128.

    vmem_limit = _vmem_limit_bytes()
    if mk is None:
        mk = _pick_mk(M)
    if tm is None:
        tm = _pick_tm(N, D, mk, budget=vmem_limit // 2)
    assert N % tm == 0 and tm % 128 == 0
    assert M % mk == 0 and (mk == M or mk % 8 == 0)

    # Layout plumbing in the wrapper (no per-step in-kernel transposes / relayouts).
    # TODO(synk): if anchor/pos come from an upstream matmul, have the producer emit
    # [D, N] directly instead of paying these .T copies here.
    anchor_t = anchor.astype(jnp.float32).T                           # [D, N]
    pos_t = pos_pair.astype(jnp.float32).T                            # [D, N]
    neg = neg_pair.astype(jnp.bfloat16 if use_bf16_matmul else jnp.float32)  # [M, D]
    plab = pseudo_label.reshape(1, N).astype(jnp.int32)
    plab_all = pseudo_label_all.reshape(M, 1).astype(jnp.int32)
    thr = float(bdp_threshold + fdp_threshold)
    thr_minus_fc = (thr - FC.astype(jnp.float32)).reshape(1, N)       # fold thr & FC once
    fc_all = FC_all.reshape(M, 1).astype(jnp.float32)

    kernel = functools.partial(_contrastive_kernel, temp=float(temp), eps=float(eps))

    n_tiles, m_tiles = N // tm, M // mk
    cost = pl.CostEstimate(
        flops=int(2 * N * M * D + 2 * N * D + 8 * N * M),
        transcendentals=int(N * M + (2 * m_tiles + 2) * N),
        bytes_accessed=int(4 * (2 * N * D + 3 * N)
                           + neg.dtype.itemsize * n_tiles * M * D
                           + 4 * n_tiles * 2 * M))

    out = pl.pallas_call(
        kernel,
        out_shape=jax.ShapeDtypeStruct((1, N), jnp.float32),
        grid_spec=pltpu.PrefetchScalarGridSpec(
            num_scalar_prefetch=0,
            grid=(n_tiles, m_tiles),                                  # M (reduction) axis last
            in_specs=[
                pl.BlockSpec((D, tm), lambda i, k: (0, i)),           # anchor^T
                pl.BlockSpec((D, tm), lambda i, k: (0, i)),           # pos_pair^T
                pl.BlockSpec((mk, D), lambda i, k: (k, 0)),           # neg_pair M block
                pl.BlockSpec((1, tm), lambda i, k: (0, i)),           # pseudo_label row
                pl.BlockSpec((mk, 1), lambda i, k: (k, 0)),           # pseudo_label_all col
                pl.BlockSpec((1, tm), lambda i, k: (0, i)),           # thr - FC row
                pl.BlockSpec((mk, 1), lambda i, k: (k, 0)),           # FC_all col
            ],
            out_specs=pl.BlockSpec((1, tm), lambda i, k: (0, i)),     # resident across k
            scratch_shapes=[pltpu.VMEM((1, tm), jnp.float32),         # pos
                            pltpu.VMEM((1, tm), jnp.float32),         # running max
                            pltpu.VMEM((1, tm), jnp.float32)],        # running (masked) sum
        ),
        compiler_params=pltpu.CompilerParams(
            dimension_semantics=("parallel", "arbitrary"),
            vmem_limit_bytes=int(vmem_limit)),
        cost_estimate=cost,
    )(anchor_t, pos_t, neg, plab, plab_all, thr_minus_fc, fc_all)
    return out.reshape(N)


def _reference(anchor, pos_pair, neg_pair, pseudo_label, pseudo_label_all,
               FC, FC_all, bdp_threshold, fdp_threshold, temp=0.1, eps=1e-8):
    pos = jnp.sum(anchor * pos_pair / temp, axis=-1, keepdims=True)
    mask_pixel = (pseudo_label[:, None] != pseudo_label_all[None, :]).astype(jnp.float32)
    mask_patch = ((FC[:, None] + FC_all[None, :]) <= (bdp_threshold + fdp_threshold)
                  ).astype(jnp.float32)
    ones = jnp.ones((mask_pixel.shape[0], 1), jnp.float32)
    mask_pixel = jnp.concatenate([ones, mask_pixel], axis=1)
    mask_patch = jnp.concatenate([ones, mask_patch], axis=1)
    neg = jnp.matmul(anchor, neg_pair.T) / temp
    neg = jnp.concatenate([pos, neg], axis=1)
    mx = jnp.max(neg, axis=1, keepdims=True)
    exp_neg = jnp.sum(jnp.exp(neg - mx) * mask_pixel * mask_patch, axis=-1)
    loss = jnp.exp(pos - mx)[:, 0] / (exp_neg + eps)
    return -jnp.log(loss + eps)


if __name__ == "__main__":
    key = jax.random.PRNGKey(0)

    def make_inputs(key, N, D, M):
        k1, k2, k3, k4, k5, k6, k7 = jax.random.split(key, 7)
        anchor = jax.random.normal(k1, (N, D), jnp.float32)
        pos_pair = jax.random.normal(k2, (N, D), jnp.float32)
        neg_pair = jax.random.normal(k3, (M, D), jnp.float32)
        pseudo_label = jax.random.randint(k4, (N,), 0, 4, jnp.int32)
        pseudo_label_all = jax.random.randint(k5, (M,), 0, 4, jnp.int32)
        FC = jax.random.uniform(k6, (N,), jnp.float32)
        FC_all = jax.random.uniform(k7, (M,), jnp.float32)
        return anchor, pos_pair, neg_pair, pseudo_label, pseudo_label_all, FC, FC_all

    bdp_threshold, fdp_threshold = 0.5, 0.5

    # (256, 32, 128): single M block, 2 N tiles (both v7x cores busy).
    # (256, 32, 640): exercises the online-softmax M blocking (mk=128 -> 5 M steps).
    for (N, D, M) in ((256, 32, 128), (256, 32, 640)):
        args = make_inputs(key, N, D, M)
        loss = contrastive_loss(*args,
                                bdp_threshold=bdp_threshold,
                                fdp_threshold=fdp_threshold)
        loss = jax.block_until_ready(loss)
        ref = _reference(*args, bdp_threshold, fdp_threshold)
        assert loss.shape == (N,)
        assert jnp.allclose(loss, ref, rtol=1e-5, atol=1e-5), f"mismatch vs reference at {(N, D, M)}"

    print("KERNEL_OK")
</pallas_src>

<mosaic_0001>
module attributes {stable_mosaic.version = 11 : i64} {
  func.func @_contrastive_kernel(%arg0: i32, %arg1: i32, %arg2: memref<32x128xf32, #tpu.memory_space<vmem>>, %arg3: memref<32x128xf32, #tpu.memory_space<vmem>>, %arg4: memref<128x32xf32, #tpu.memory_space<vmem>>, %arg5: memref<1x128xi32, #tpu.memory_space<vmem>>, %arg6: memref<128x1xi32, #tpu.memory_space<vmem>>, %arg7: memref<1x128xf32, #tpu.memory_space<vmem>>, %arg8: memref<128x1xf32, #tpu.memory_space<vmem>>, %arg9: memref<1x128xf32, #tpu.memory_space<vmem>>, %arg10: memref<1x128xf32, #tpu.memory_space<vmem>>, %arg11: memref<1x128xf32, #tpu.memory_space<vmem>>, %arg12: memref<1x128xf32, #tpu.memory_space<vmem>>) attributes {dimension_semantics = [#tpu.dimension_semantics<parallel>, #tpu.dimension_semantics<arbitrary>], iteration_bounds = array<i64: 2, 1>, scalar_prefetch = 0 : i64, scratch_operands = 3 : i64, tpu.core_type = #tpu.core_type<tc>, window_params = [{transform_indices = @transform_0, window_bounds = array<i64: 32, 128>}, {transform_indices = @transform_1, window_bounds = array<i64: 32, 128>}, {transform_indices = @transform_2, window_bounds = array<i64: 128, 32>}, {transform_indices = @transform_3, window_bounds = array<i64: 1, 128>}, {transform_indices = @transform_4, window_bounds = array<i64: 128, 1>}, {transform_indices = @transform_5, window_bounds = array<i64: 1, 128>}, {transform_indices = @transform_6, window_bounds = array<i64: 128, 1>}, {transform_indices = @transform_7, window_bounds = array<i64: 1, 128>}]} {
    %c0 = arith.constant 0 : index
    %c0_0 = arith.constant 0 : index
    %0 = vector.load %arg2[%c0, %c0_0] : memref<32x128xf32, #tpu.memory_space<vmem>>, vector<32x128xf32>
    %cst = arith.constant 1.000000e+01 : f32
    %1 = vector.broadcast %cst : f32 to vector<32x128xf32>
    %2 = arith.mulf %0, %1 : vector<32x128xf32>
    %c0_i32 = arith.constant 0 : i32
    %3 = arith.cmpi eq, %arg1, %c0_i32 : i32
    %4 = arith.extui %3 : i1 to i32
    %c0_i32_1 = arith.constant 0 : i32
    %5 = arith.cmpi ne, %4, %c0_i32_1 : i32
    scf.if %5 {
      %c0_26 = arith.constant 0 : index
      %c0_27 = arith.constant 0 : index
      %40 = vector.load %arg3[%c0_26, %c0_27] : memref<32x128xf32, #tpu.memory_space<vmem>>, vector<32x128xf32>
      %41 = arith.mulf %2, %40 : vector<32x128xf32>
      %cst_28 = arith.constant dense<0.000000e+00> : vector<128xf32>
      %42 = vector.multi_reduction <add>, %41, %cst_28 [0] : vector<32x128xf32> to vector<128xf32>
      %43 = vector.shape_cast %42 : vector<128xf32> to vector<1x128xf32>
      %c0_29 = arith.constant 0 : index
      %c0_30 = arith.constant 0 : index
      %44 = vector.load %arg10[%c0_29, %c0_30] : memref<1x128xf32, #tpu.memory_space<vmem>>, vector<1x128xf32>
      tpu.vector_store %arg10[%c0_29, %c0_30], %43 {strides = array<i32>} : memref<1x128xf32, #tpu.memory_space<vmem>>, vector<1x128xf32>,
      %c0_31 = arith.constant 0 : index
      %c0_32 = arith.constant 0 : index
      %45 = vector.load %arg11[%c0_31, %c0_32] : memref<1x128xf32, #tpu.memory_space<vmem>>, vector<1x128xf32>
      tpu.vector_store %arg11[%c0_31, %c0_32], %43 {strides = array<i32>} : memref<1x128xf32, #tpu.memory_space<vmem>>, vector<1x128xf32>,
      %cst_33 = arith.constant 1.000000e+00 : f32
      %46 = vector.broadcast %cst_33 : f32 to vector<1x128xf32>
      %c0_34 = arith.constant 0 : index
      %c0_35 = arith.constant 0 : index
      %47 = vector.load %arg12[%c0_34, %c0_35] : memref<1x128xf32, #tpu.memory_space<vmem>>, vector<1x128xf32>
      tpu.vector_store %arg12[%c0_34, %c0_35], %46 {strides = array<i32>} : memref<1x128xf32, #tpu.memory_space<vmem>>, vector<1x128xf32>,
    } else {
    }
    %c0_2 = arith.constant 0 : index
    %c0_3 = arith.constant 0 : index
    %6 = vector.load %arg4[%c0_2, %c0_3] : memref<128x32xf32, #tpu.memory_space<vmem>>, vector<128x32xf32>
    %cst_4 = arith.constant dense<0.000000e+00> : vector<128x128xf32>
    %7 = tpu.matmul %6, %2, %cst_4 {dimension_numbers = #tpu.dot_dimension_numbers<[1], [0], [0], [1], [0, 0, 1, 1], [], []>} : vector<128x32xf32>, vector<32x128xf32>, vector<128x128xf32> -> vector<128x128xf32>
    %c0_5 = arith.constant 0 : index
    %c0_6 = arith.constant 0 : index
    %8 = vector.load %arg11[%c0_5, %c0_6] : memref<1x128xf32, #tpu.memory_space<vmem>>, vector<1x128xf32>
    %cst_7 = arith.constant dense<0xFF800000> : vector<128xf32>
    %9 = vector.multi_reduction <maximumf>, %7, %cst_7 [0] : vector<128x128xf32> to vector<128xf32>
    %10 = vector.shape_cast %9 : vector<128xf32> to vector<1x128xf32>
    %11 = arith.maximumf %8, %10 : vector<1x128xf32>
    %c0_8 = arith.constant 0 : index
    %c0_9 = arith.constant 0 : index
    %12 = vector.load %arg6[%c0_8, %c0_9] : memref<128x1xi32, #tpu.memory_space<vmem>>, vector<128x1xi32>
    %c0_10 = arith.constant 0 : index
    %c0_11 = arith.constant 0 : index
    %13 = vector.load %arg5[%c0_10, %c0_11] : memref<1x128xi32, #tpu.memory_space<vmem>>, vector<1x128xi32>
    %14 = vector.broadcast %12 : vector<128x1xi32> to vector<128x128xi32>
    %15 = vector.broadcast %13 : vector<1x128xi32> to vector<128x128xi32>
    %16 = arith.cmpi ne, %14, %15 : vector<128x128xi32>
    %c0_12 = arith.constant 0 : index
    %c0_13 = arith.constant 0 : index
    %17 = vector.load %arg8[%c0_12, %c0_13] : memref<128x1xf32, #tpu.memory_space<vmem>>, vector<128x1xf32>
    %c0_14 = arith.constant 0 : index
    %c0_15 = arith.constant 0 : index
    %18 = vector.load %arg7[%c0_14, %c0_15] : memref<1x128xf32, #tpu.memory_space<vmem>>, vector<1x128xf32>
    %19 = vector.broadcast %17 : vector<128x1xf32> to vector<128x128xf32>
    %20 = vector.broadcast %18 : vector<1x128xf32> to vector<128x128xf32>
    %21 = arith.cmpf ole, %19, %20 : vector<128x128xf32>
    %22 = arith.andi %16, %21 : vector<128x128xi1>
    %23 = vector.broadcast %11 : vector<1x128xf32> to vector<128x128xf32>
    %24 = arith.subf %7, %23 : vector<128x128xf32>
    %25 = math.exp %24 : vector<128x128xf32>
    %cst_16 = arith.constant 0.000000e+00 : f32
    %26 = vector.broadcast %cst_16 : f32 to vector<128x128xf32>
    %27 = arith.select %22, %25, %26 : vector<128x128xi1>, vector<128x128xf32>
    %c0_17 = arith.constant 0 : index
    %c0_18 = arith.constant 0 : index
    %28 = vector.load %arg12[%c0_17, %c0_18] : memref<1x128xf32, #tpu.memory_space<vmem>>, vector<1x128xf32>
    %29 = arith.subf %8, %11 : vector<1x128xf32>
    %30 = math.exp %29 : vector<1x128xf32>
    %31 = arith.mulf %28, %30 : vector<1x128xf32>
    %cst_19 = arith.constant dense<0.000000e+00> : vector<128xf32>
    %32 = vector.multi_reduction <add>, %27, %cst_19 [0] : vector<128x128xf32> to vector<128xf32>
    %33 = vector.shape_cast %32 : vector<128xf32> to vector<1x128xf32>
    %34 = arith.addf %31, %33 : vector<1x128xf32>
    %c0_20 = arith.constant 0 : index
    %c0_21 = arith.constant 0 : index
    %35 = vector.load %arg12[%c0_20, %c0_21] : memref<1x128xf32, #tpu.memory_space<vmem>>, vector<1x128xf32>
    tpu.vector_store %arg12[%c0_20, %c0_21], %34 {strides = array<i32>} : memref<1x128xf32, #tpu.memory_space<vmem>>, vector<1x128xf32>,
    %c0_22 = arith.constant 0 : index
    %c0_23 = arith.constant 0 : index
    %36 = vector.load %arg11[%c0_22, %c0_23] : memref<1x128xf32, #tpu.memory_space<vmem>>, vector<1x128xf32>
    tpu.vector_store %arg11[%c0_22, %c0_23], %11 {strides = array<i32>} : memref<1x128xf32, #tpu.memory_space<vmem>>, vector<1x128xf32>,
    %c0_i32_24 = arith.constant 0 : i32
    %37 = arith.cmpi eq, %arg1, %c0_i32_24 : i32
    %38 = arith.extui %37 : i1 to i32
    %c0_i32_25 = arith.constant 0 : i32
    %39 = arith.cmpi ne, %38, %c0_i32_25 : i32
    scf.if %39 {
      %c0_26 = arith.constant 0 : index
      %c0_27 = arith.constant 0 : index
      %40 = vector.load %arg10[%c0_26, %c0_27] : memref<1x128xf32, #tpu.memory_space<vmem>>, vector<1x128xf32>
      %c0_28 = arith.constant 0 : index
      %c0_29 = arith.constant 0 : index
      %41 = vector.load %arg11[%c0_28, %c0_29] : memref<1x128xf32, #tpu.memory_space<vmem>>, vector<1x128xf32>
      %42 = arith.subf %40, %41 : vector<1x128xf32>
      %43 = math.exp %42 : vector<1x128xf32>
      %c0_30 = arith.constant 0 : index
      %c0_31 = arith.constant 0 : index
      %44 = vector.load %arg12[%c0_30, %c0_31] : memref<1x128xf32, #tpu.memory_space<vmem>>, vector<1x128xf32>
      %cst_32 = arith.constant 9.99999993E-9 : f32
      %45 = vector.broadcast %cst_32 : f32 to vector<1x128xf32>
      %46 = arith.addf %44, %45 : vector<1x128xf32>
      %47 = arith.divf %43, %46 : vector<1x128xf32>
      %cst_33 = arith.constant 9.99999993E-9 : f32
      %48 = vector.broadcast %cst_33 : f32 to vector<1x128xf32>
      %49 = arith.addf %47, %48 : vector<1x128xf32>
      %50 = math.log %49 : vector<1x128xf32>
      %cst_34 = arith.constant 0.000000e+00 : f32
      %51 = vector.broadcast %cst_34 : f32 to vector<1x128xf32>
      %52 = arith.subf %51, %50 : vector<1x128xf32>
      %c0_35 = arith.constant 0 : index
      %c0_36 = arith.constant 0 : index
      %53 = vector.load %arg9[%c0_35, %c0_36] : memref<1x128xf32, #tpu.memory_space<vmem>>, vector<1x128xf32>
      tpu.vector_store %arg9[%c0_35, %c0_36], %52 {strides = array<i32>} : memref<1x128xf32, #tpu.memory_space<vmem>>, vector<1x128xf32>,
    } else {
    }
    return
  }
  func.func @transform_0(%arg0: i32, %arg1: i32) -> (i32, i32) {
    %c0_i32 = arith.constant 0 : i32
    %c0_i32_0 = arith.constant 0 : i32
    return %c0_i32, %arg0 : i32, i32
  }
  func.func @transform_1(%arg0: i32, %arg1: i32) -> (i32, i32) {
    %c0_i32 = arith.constant 0 : i32
    %c0_i32_0 = arith.constant 0 : i32
    return %c0_i32, %arg0 : i32, i32
  }
  func.func @transform_2(%arg0: i32, %arg1: i32) -> (i32, i32) {
    %c0_i32 = arith.constant 0 : i32
    %c0_i32_0 = arith.constant 0 : i32
    return %arg1, %c0_i32 : i32, i32
  }
  func.func @transform_3(%arg0: i32, %arg1: i32) -> (i32, i32) {
    %c0_i32 = arith.constant 0 : i32
    %c0_i32_0 = arith.constant 0 : i32
    return %c0_i32, %arg0 : i32, i32
  }
  func.func @transform_4(%arg0: i32, %arg1: i32) -> (i32, i32) {
    %c0_i32 = arith.constant 0 : i32
    %c0_i32_0 = arith.constant 0 : i32
    return %arg1, %c0_i32 : i32, i32
  }
  func.func @transform_5(%arg0: i32, %arg1: i32) -> (i32, i32) {
    %c0_i32 = arith.constant 0 : i32
    %c0_i32_0 = arith.constant 0 : i32
    return %c0_i32, %arg0 : i32, i32
  }
  func.func @transform_6(%arg0: i32, %arg1: i32) -> (i32, i32) {
    %c0_i32 = arith.constant 0 : i32
    %c0_i32_0 = arith.constant 0 : i32
    return %arg1, %c0_i32 : i32, i32
  }
  func.func @transform_7(%arg0: i32, %arg1: i32) -> (i32, i32) {
    %c0_i32 = arith.constant 0 : i32
    %c0_i32_0 = arith.constant 0 : i32
    return %c0_i32, %arg0 : i32, i32
  }
}

</mosaic_0001>

<llo_original>
// kernel: tpu_custom_call.1
$region0: #{tpu_custom_call.1}
  #allocation0 [shape = 'u32[]', space=smem, size = 0x4, offset = 0x4, fixed_abs, tag = 'smem constant byte address 0x4 - core index']
  #allocation1 [shape = 'u32[144,128]{1,0:T(1,128)}', space=vmem, size = 0x12000, scoped, tag = 'internal scratch']
  #allocation2 [shape = 'f32[1,128]{1,0:T(1,128)}', space=vmem, size = 0x200, scoped, tag = 'scratch operand']
  #allocation3 [shape = 'f32[1,128]{1,0:T(1,128)}', space=vmem, size = 0x200, scoped, tag = 'scratch operand']
  #allocation4 [shape = 'f32[1,128]{1,0:T(1,128)}', space=vmem, size = 0x200, scoped, tag = 'scratch operand']
  %s0 = inlined_call_operand.vmem [shape: f32[32,256], index: 0, kind: input, shape index: {}]
  %s1 = inlined_call_operand.vmem [shape: f32[32,256], index: 1, kind: input, shape index: {}]
  %s2 = inlined_call_operand.vmem [shape: f32[128,32], index: 2, kind: input, shape index: {}]
  %s3 = inlined_call_operand.vmem [shape: s32[1,256], index: 3, kind: input, shape index: {}]
  %s4 = inlined_call_operand.vmem [shape: s32[128,1], index: 4, kind: input, shape index: {}]
  %s5 = inlined_call_operand.vmem [shape: f32[1,256], index: 5, kind: input, shape index: {}]
  %s6 = inlined_call_operand.vmem [shape: f32[128,1], index: 6, kind: input, shape index: {}]
  %s7 = inlined_call_operand.hbm [shape: f32[1,256], index: 7, kind: output, shape index: {}]
  %s8 = sld [smem:[#allocation0]]
  $region145: #{tpu_custom_call.1} parent=0
    _
  %s10 = ssub.s32 1, %s8
  %s11 = scalar_select 0, %s10, %s8
  $region1: #{tpu_custom_call.1} parent=0
    #allocation5 [shape = 'u8[32768]{0}', space=vmem, size = 0x8000, scoped, tag = 'input window, operand 0']
    #allocation6 [shape = 'u8[32768]{0}', space=vmem, size = 0x8000, scoped, tag = 'input window, operand 1']
    #allocation7 [shape = 'u8[1024]{0}', space=vmem, size = 0x400, scoped, tag = 'output window, operand 0']
    #allocation8 [shape = 's32[2]{0}', space=sflag, size = 0x8, scoped, tag = 'scoped memory for tpu_custom_call.1']
    %12 = vsyncpa [#allocation8], 0
    %s13 = scalar_lea.sflag [#allocation8], 1
    %14 = vsyncpa %s13, 0
    loop: start=0, step=1, limit=4
    $region2: #{tpu_custom_call.1} parent=1 // loop_pre_header
      _
    $region3: #{tpu_custom_call.1} parent=1 // loop_header
      %s16 = sphi 0, %s20
      %p17 = scmp.ge.s32.totalorder %s16, 4
      %s23 = sphi 0, %s35
      %s24 = sphi 0, %s31
      %s25 = sphi 0, %s23
      %s26 = sphi 0, %s24
      %s27 = sphi 0, %s25
      %s28 = sphi 0, %s26
      %s38 = sphi 0, %s40
      %s41 = sphi 0, %s38
      %s42 = sphi 0, %s41
      %s58 = sphi 0, %s42
      %s64 = sphi 0, %s66
      %s67 = sphi 0, %s64
      %s68 = sphi 0, %s67
      %s84 = sphi 0, %s68
      %s90 = sphi 0, %s92
      %s93 = sphi 0, %s90
      %s94 = sphi 0, %s93
      %s110 = sphi 0, %s94
      %s116 = sphi 0, %s118
      %s119 = sphi 0, %s116
      %s120 = sphi 0, %s119
      %s136 = sphi 0, %s120
      %s142 = sphi 0, %s144
      %s145 = sphi 0, %s142
      %s146 = sphi 0, %s145
      %s162 = sphi 0, %s146
      %s168 = sphi 0, %s170
      %s171 = sphi 0, %s168
      %s172 = sphi 0, %s171
      %s188 = sphi 0, %s172
      %s194 = sphi 0, %s196
      %s197 = sphi 0, %s194
      %s198 = sphi 0, %s197
      %s214 = sphi 0, %s198
      %s220 = sphi 0, %s222
      %s223 = sphi 0, %s220
      %s224 = sphi 0, %s223
      %s240 = sphi 0, %s224
    $region4: #{tpu_custom_call.1} parent=1 // loop_header_branch
      %19 = sbr.rel (%p17) target = $region8
    $region5: #{tpu_custom_call.1} parent=1 // loop_body
      %s21 = ssub.s32 %s16, 1
      %s22 = ssub.s32 %s16, 2
      %s29 = sadd.s32 1, %s24
      %p30 = scmp.ge.s32.totalorder %s29, 1
      %s31 = scalar_select %p30, 0, %s29
      %s32 = sadd.s32 1, %s23
      %s33 = scalar_select %p30, %s32, %s23
      %p34 = scmp.ge.s32.totalorder %s33, 2
      %s35 = scalar_select %p34, 0, %s33
      %s36 = ssub.s32 %s23, %s35
      %p37 = scmp.eq.s32.totalorder %s36, 0
      %s39 = sadd.s32 %s38, 1
      %s40 = scalar_select %p37, %s38, %s39
      %p43 = pneg %p37
      %p44 = scmp.eq.s32.totalorder %s16, 1
      %p45 = por %p43, %p44
      %p46 = scmp.ne.s32.totalorder %s38, %s41
      %p47 = scmp.eq.s32.totalorder %s16, 0
      %p48 = por %p46, %p47
      %p49 = scmp.ne.s32.totalorder %s38, %s41
      %p50 = scmp.eq.s32.totalorder %s21, 1
      %p51 = por %p49, %p50
      %p52 = scmp.ne.s32.totalorder %s41, %s42
      %p53 = scmp.eq.s32.totalorder %s21, 0
      %p54 = por %p52, %p53
      %p55 = scmp.ne.s32.totalorder %s41, %s42
      %p56 = scmp.eq.s32.totalorder %s22, 1
      %p57 = por %p55, %p56
      %p59 = scmp.ne.s32.totalorder %s42, %s58
      %p60 = scmp.eq.s32.totalorder %s22, 0
      %p61 = por %p59, %p60
      %s62 = ssub.s32 %s23, %s35
      %p63 = scmp.eq.s32.totalorder %s62, 0
      %s65 = sadd.s32 %s64, 1
      %s66 = scalar_select %p63, %s64, %s65
      %p69 = pneg %p63
      %p70 = scmp.eq.s32.totalorder %s16, 1
      %p71 = por %p69, %p70
      %p72 = scmp.ne.s32.totalorder %s64, %s67
      %p73 = scmp.eq.s32.totalorder %s16, 0
      %p74 = por %p72, %p73
      %p75 = scmp.ne.s32.totalorder %s64, %s67
      %p76 = scmp.eq.s32.totalorder %s21, 1
      %p77 = por %p75, %p76
      %p78 = scmp.ne.s32.totalorder %s67, %s68
      %p79 = scmp.eq.s32.totalorder %s21, 0
      %p80 = por %p78, %p79
      %p81 = scmp.ne.s32.totalorder %s67, %s68
      %p82 = scmp.eq.s32.totalorder %s22, 1
      %p83 = por %p81, %p82
      %p85 = scmp.ne.s32.totalorder %s68, %s84
      %p86 = scmp.eq.s32.totalorder %s22, 0
      %p87 = por %p85, %p86
      %s88 = ssub.s32 %s24, %s31
      %p89 = scmp.eq.s32.totalorder %s88, 0
      %s91 = sadd.s32 %s90, 1
      %s92 = scalar_select %p89, %s90, %s91
      %p95 = pneg %p89
      %p96 = scmp.eq.s32.totalorder %s16, 1
      %p97 = por %p95, %p96
      %p98 = scmp.ne.s32.totalorder %s90, %s93
      %p99 = scmp.eq.s32.totalorder %s16, 0
      %p100 = por %p98, %p99
      %p101 = scmp.ne.s32.totalorder %s90, %s93
      %p102 = scmp.eq.s32.totalorder %s21, 1
      %p103 = por %p101, %p102
      %p104 = scmp.ne.s32.totalorder %s93, %s94
      %p105 = scmp.eq.s32.totalorder %s21, 0
      %p106 = por %p104, %p105
      %p107 = scmp.ne.s32.totalorder %s93, %s94
      %p108 = scmp.eq.s32.totalorder %s22, 1
      %p109 = por %p107, %p108
      %p111 = scmp.ne.s32.totalorder %s94, %s110
      %p112 = scmp.eq.s32.totalorder %s22, 0
      %p113 = por %p111, %p112
      %s114 = ssub.s32 %s23, %s35
      %p115 = scmp.eq.s32.totalorder %s114, 0
      %s117 = sadd.s32 %s116, 1
      %s118 = scalar_select %p115, %s116, %s117
      %p121 = pneg %p115
      %p122 = scmp.eq.s32.totalorder %s16, 1
      %p123 = por %p121, %p122
      %p124 = scmp.ne.s32.totalorder %s116, %s119
      %p125 = scmp.eq.s32.totalorder %s16, 0
      %p126 = por %p124, %p125
      %p127 = scmp.ne.s32.totalorder %s116, %s119
      %p128 = scmp.eq.s32.totalorder %s21, 1
      %p129 = por %p127, %p128
      %p130 = scmp.ne.s32.totalorder %s119, %s120
      %p131 = scmp.eq.s32.totalorder %s21, 0
      %p132 = por %p130, %p131
      %p133 = scmp.ne.s32.totalorder %s119, %s120
      %p134 = scmp.eq.s32.totalorder %s22, 1
      %p135 = por %p133, %p134
      %p137 = scmp.ne.s32.totalorder %s120, %s136
      %p138 = scmp.eq.s32.totalorder %s22, 0
      %p139 = por %p137, %p138
      %s140 = ssub.s32 %s24, %s31
      %p141 = scmp.eq.s32.totalorder %s140, 0
      %s143 = sadd.s32 %s142, 1
      %s144 = scalar_select %p141, %s142, %s143
      %p147 = pneg %p141
      %p148 = scmp.eq.s32.totalorder %s16, 1
      %p149 = por %p147, %p148
      %p150 = scmp.ne.s32.totalorder %s142, %s145
      %p151 = scmp.eq.s32.totalorder %s16, 0
      %p152 = por %p150, %p151
      %p153 = scmp.ne.s32.totalorder %s142, %s145
      %p154 = scmp.eq.s32.totalorder %s21, 1
      %p155 = por %p153, %p154
      %p156 = scmp.ne.s32.totalorder %s145, %s146
      %p157 = scmp.eq.s32.totalorder %s21, 0
      %p158 = por %p156, %p157
      %p159 = scmp.ne.s32.totalorder %s145, %s146
      %p160 = scmp.eq.s32.totalorder %s22, 1
      %p161 = por %p159, %p160
      %p163 = scmp.ne.s32.totalorder %s146, %s162
      %p164 = scmp.eq.s32.totalorder %s22, 0
      %p165 = por %p163, %p164
      %s166 = ssub.s32 %s23, %s35
      %p167 = scmp.eq.s32.totalorder %s166, 0
      %s169 = sadd.s32 %s168, 1
      %s170 = scalar_select %p167, %s168, %s169
      %p173 = pneg %p167
      %p174 = scmp.eq.s32.totalorder %s16, 1
      %p175 = por %p173, %p174
      %p176 = scmp.ne.s32.totalorder %s168, %s171
      %p177 = scmp.eq.s32.totalorder %s16, 0
      %p178 = por %p176, %p177
      %p179 = scmp.ne.s32.totalorder %s168, %s171
      %p180 = scmp.eq.s32.totalorder %s21, 1
      %p181 = por %p179, %p180
      %p182 = scmp.ne.s32.totalorder %s171, %s172
      %p183 = scmp.eq.s32.totalorder %s21, 0
      %p184 = por %p182, %p183
      %p185 = scmp.ne.s32.totalorder %s171, %s172
      %p186 = scmp.eq.s32.totalorder %s22, 1
      %p187 = por %p185, %p186
      %p189 = scmp.ne.s32.totalorder %s172, %s188
      %p190 = scmp.eq.s32.totalorder %s22, 0
      %p191 = por %p189, %p190
      %s192 = ssub.s32 %s24, %s31
      %p193 = scmp.eq.s32.totalorder %s192, 0
      %s195 = sadd.s32 %s194, 1
      %s196 = scalar_select %p193, %s194, %s195
      %p199 = pneg %p193
      %p200 = scmp.eq.s32.totalorder %s16, 1
      %p201 = por %p199, %p200
      %p202 = scmp.ne.s32.totalorder %s194, %s197
      %p203 = scmp.eq.s32.totalorder %s16, 0
      %p204 = por %p202, %p203
      %p205 = scmp.ne.s32.totalorder %s194, %s197
      %p206 = scmp.eq.s32.totalorder %s21, 1
      %p207 = por %p205, %p206
      %p208 = scmp.ne.s32.totalorder %s197, %s198
      %p209 = scmp.eq.s32.totalorder %s21, 0
      %p210 = por %p208, %p209
      %p211 = scmp.ne.s32.totalorder %s197, %s198
      %p212 = scmp.eq.s32.totalorder %s22, 1
      %p213 = por %p211, %p212
      %p215 = scmp.ne.s32.totalorder %s198, %s214
      %p216 = scmp.eq.s32.totalorder %s22, 0
      %p217 = por %p215, %p216
      %s218 = ssub.s32 %s23, %s35
      %p219 = scmp.eq.s32.totalorder %s218, 0
      %s221 = sadd.s32 %s220, 1
      %s222 = scalar_select %p219, %s220, %s221
      %p225 = pneg %p219
      %p226 = scmp.eq.s32.totalorder %s16, 1
      %p227 = por %p225, %p226
      %p228 = scmp.ne.s32.totalorder %s220, %s223
      %p229 = scmp.eq.s32.totalorder %s16, 0
      %p230 = por %p228, %p229
      %p231 = scmp.ne.s32.totalorder %s220, %s223
      %p232 = scmp.eq.s32.totalorder %s21, 1
      %p233 = por %p231, %p232
      %p234 = scmp.ne.s32.totalorder %s223, %s224
      %p235 = scmp.eq.s32.totalorder %s21, 0
      %p236 = por %p234, %p235
      %p237 = scmp.ne.s32.totalorder %s223, %s224
      %p238 = scmp.eq.s32.totalorder %s22, 1
      %p239 = por %p237, %p238
      %p241 = scmp.ne.s32.totalorder %s224, %s240
      %p242 = scmp.eq.s32.totalorder %s22, 0
      %p243 = por %p241, %p242
      %p244 = scmp.le.s32.totalorder 1, %s16
      %p245 = scmp.lt.s32.totalorder %s16, 3
      %p246 = pnand %p244, %p245
      %p247 = pneg %p246
      // Predicated region
      $region9: #{tpu_custom_call.1} parent=5 // pred_check
        _
      $region10: #{tpu_custom_call.1} parent=5 // pred_check_branch
        %249 = sbr.rel (%p246) target = $region12
      $region11: #{tpu_custom_call.1} parent=5 // pred_region
        %s250 = ssub.s32 %s16, 1
        // Predicated region
        $region13: #{tpu_custom_call.1} parent=11 // pred_check
          %p251 = pneg %p106
        $region14: #{tpu_custom_call.1} parent=11 // pred_check_branch
          %253 = sbr.rel (%p251) target = $region16
        $region15: #{tpu_custom_call.1} parent=11 // pred_region
          %s254 = smul.u32 16, %s26
          %p255 = scmp.lt.s32.totalorder %s254, 15
          %s256 = scalar_select %p255, %s254, 15
          %s257 = smul.addr %s256, 8
          %s258 = scalar_lea.vmem %s2, %s257
          %s259 = smul.u32 16, %s26
        $region16: #{tpu_custom_call.1} parent=11 // pred_fallthru
          _
        // Predicated region
        $region17: #{tpu_custom_call.1} parent=11 // pred_check
          %p260 = pneg %p158
        $region18: #{tpu_custom_call.1} parent=11 // pred_check_branch
          %262 = sbr.rel (%p260) target = $region20
        $region19: #{tpu_custom_call.1} parent=11 // pred_region
          %s263 = smul.u32 16, %s26
          %p264 = scmp.lt.s32.totalorder %s263, 15
          %s265 = scalar_select %p264, %s263, 15
          %s266 = smul.addr %s265, 8
          %s267 = scalar_lea.vmem %s4, %s266
          %s268 = smul.u32 16, %s26
        $region20: #{tpu_custom_call.1} parent=11 // pred_fallthru
          _
        // Predicated region
        $region21: #{tpu_custom_call.1} parent=11 // pred_check
          %p269 = pneg %p210
        $region22: #{tpu_custom_call.1} parent=11 // pred_check_branch
          %271 = sbr.rel (%p269) target = $region24
        $region23: #{tpu_custom_call.1} parent=11 // pred_region
          %s272 = smul.u32 16, %s26
          %p273 = scmp.lt.s32.totalorder %s272, 15
          %s274 = scalar_select %p273, %s272, 15
          %s275 = smul.addr %s274, 8
          %s276 = scalar_lea.vmem %s6, %s275
          %s277 = smul.u32 16, %s26
        $region24: #{tpu_custom_call.1} parent=11 // pred_fallthru
          _
      $region12: #{tpu_custom_call.1} parent=5 // pred_fallthru
        _
      %p278 = scmp.lt.s32.totalorder %s16, 2
      // Predicated region
      $region25: #{tpu_custom_call.1} parent=5 // pred_check
        %p279 = pneg %p278
      $region26: #{tpu_custom_call.1} parent=5 // pred_check_branch
        %281 = sbr.rel (%p279) target = $region28
      $region27: #{tpu_custom_call.1} parent=5 // pred_region
        // Predicated region
        $region29: #{tpu_custom_call.1} parent=27 // pred_check
          %p282 = pneg %p48
        $region30: #{tpu_custom_call.1} parent=27 // pred_check_branch
          %284 = sbr.rel (%p282) target = $region32
        $region31: #{tpu_custom_call.1} parent=27 // pred_region
          %s285 = sand.u32 %s38, 1
          %s286 = sand.u32 %s38, 1
          %s287 = smul.addr %s286, 32
          %s288 = scalar_lea.vmem [#allocation5], %s287
          %s289 = smul.addr %s23, 8
          %s290 = scalar_lea.vmem %s0, %s289
          // Predicated region
          $region33: #{tpu_custom_call.1} parent=31 // pred_check
            _
          $region34: #{tpu_custom_call.1} parent=31 // pred_check_branch
            %292 = sbr.rel (0) target = $region36
          $region35: #{tpu_custom_call.1} parent=31 // pred_region
            // Predicated region
            $region37: #{tpu_custom_call.1} parent=35 // pred_check
              _
            $region38: #{tpu_custom_call.1} parent=35 // pred_check_branch
              %294 = sbr.rel (0) target = $region40
            $region39: #{tpu_custom_call.1} parent=35 // pred_region
              // Predicated region
              $region52: #{tpu_custom_call.1} parent=39 // pred_check
                _
              $region53: #{tpu_custom_call.1} parent=39 // pred_check_branch
                %316 = sbr.rel (0) target = $region55
              $region54: #{tpu_custom_call.1} parent=39 // pred_region
                loop: start=0, step=1, limit=1
                $region56: #{tpu_custom_call.1} parent=54 // loop_pre_header
                  _
                $region57: #{tpu_custom_call.1} parent=54 // loop_header
                  %s318 = sphi 0, %s322
                  %p319 = scmp.ge.s32.totalorder %s318, 1
                  %s323 = sphi %s290, %s290
                  %s324 = sphi %s288, %s288
                $region58: #{tpu_custom_call.1} parent=54 // loop_header_branch
                  %321 = sbr.rel (%p319) target = $region62
                $region59: #{tpu_custom_call.1} parent=54 // loop_body
                  %v325 = vld [vmem:[%s323] sm:$0xff]
                  %326 = vst [vmem:[%s324] sm:$0xff] %v325
                  %v327 = vld [vmem:[%s323 + $0x10] sm:$0xff]
                  %328 = vst [vmem:[%s324 + $0x8] sm:$0xff] %v327
                  %v329 = vld [vmem:[%s323 + $0x20] sm:$0xff]
                  %330 = vst [vmem:[%s324 + $0x10] sm:$0xff] %v329
                  %v331 = vld [vmem:[%s323 + $0x30] sm:$0xff]
                  %332 = vst [vmem:[%s324 + $0x18] sm:$0xff] %v331
                $region60: #{tpu_custom_call.1} parent=54 // loop_footer
                  %s322 = sadd.s32 1, %s318
                $region61: #{tpu_custom_call.1} parent=54 // loop_footer_branch
                  %317 = sbr.rel target = $region57
                $region62: #{tpu_custom_call.1} parent=54 // loop_exit
                  _
              $region55: #{tpu_custom_call.1} parent=39 // pred_fallthru
                _
              // Predicated region
              $region63: #{tpu_custom_call.1} parent=39 // pred_check
                _
              $region64: #{tpu_custom_call.1} parent=39 // pred_check_branch
                %334 = sbr.rel target = $region66
              $region65: #{tpu_custom_call.1} parent=39 // pred_region
                _
              $region66: #{tpu_custom_call.1} parent=39 // pred_fallthru
                _
            $region40: #{tpu_custom_call.1} parent=35 // pred_fallthru
              _
            // Predicated region
            $region41: #{tpu_custom_call.1} parent=35 // pred_check
              _
            $region42: #{tpu_custom_call.1} parent=35 // pred_check_branch
              %296 = sbr.rel target = $region44
            $region43: #{tpu_custom_call.1} parent=35 // pred_region
              %s298 = ssub.s32 256, 1
              loop: start=0, step=1, limit=1
              $region45: #{tpu_custom_call.1} parent=43 // loop_pre_header
                _
              $region46: #{tpu_custom_call.1} parent=43 // loop_header
                %s300 = sphi 0, %s304
                %p301 = scmp.ge.s32.totalorder %s300, 1
                %s305 = sphi %s290, %s290
                %s306 = sphi %s288, %s288
              $region47: #{tpu_custom_call.1} parent=43 // loop_header_branch
                %303 = sbr.rel (%p301) target = $region51
              $region48: #{tpu_custom_call.1} parent=43 // loop_body
                %v307 = vld [vmem:[%s305] sm:%s298]
                %308 = vst [vmem:[%s306] sm:%s298] %v307
                %v309 = vld [vmem:[%s305 + $0x10] sm:%s298]
                %310 = vst [vmem:[%s306 + $0x8] sm:%s298] %v309
                %v311 = vld [vmem:[%s305 + $0x20] sm:%s298]
                %312 = vst [vmem:[%s306 + $0x10] sm:%s298] %v311
                %v313 = vld [vmem:[%s305 + $0x30] sm:%s298]
                %314 = vst [vmem:[%s306 + $0x18] sm:%s298] %v313
              $region49: #{tpu_custom_call.1} parent=43 // loop_footer
                %s304 = sadd.s32 1, %s300
              $region50: #{tpu_custom_call.1} parent=43 // loop_footer_branch
                %299 = sbr.rel target = $region46
              $region51: #{tpu_custom_call.1} parent=43 // loop_exit
                _
            $region44: #{tpu_custom_call.1} parent=35 // pred_fallthru
              _
          $region36: #{tpu_custom_call.1} parent=31 // pred_fallthru
            _
          %335 = vnop
        $region32: #{tpu_custom_call.1} parent=27 // pred_fallthru
          _
        // Predicated region
        $region67: #{tpu_custom_call.1} parent=27 // pred_check
          %p336 = pneg %p74
        $region68: #{tpu_custom_call.1} parent=27 // pred_check_branch
          %338 = sbr.rel (%p336) target = $region70
        $region69: #{tpu_custom_call.1} parent=27 // pred_region
          %s339 = sand.u32 %s64, 1
          %s340 = sand.u32 %s64, 1
          %s341 = smul.addr %s340, 32
          %s342 = scalar_lea.vmem [#allocation6], %s341
          %s343 = smul.addr %s23, 8
          %s344 = scalar_lea.vmem %s1, %s343
          // Predicated region
          $region71: #{tpu_custom_call.1} parent=69 // pred_check
            _
          $region72: #{tpu_custom_call.1} parent=69 // pred_check_branch
            %346 = sbr.rel (0) target = $region74
          $region73: #{tpu_custom_call.1} parent=69 // pred_region
            // Predicated region
            $region75: #{tpu_custom_call.1} parent=73 // pred_check
              _
            $region76: #{tpu_custom_call.1} parent=73 // pred_check_branch
              %348 = sbr.rel (0) target = $region78
            $region77: #{tpu_custom_call.1} parent=73 // pred_region
              // Predicated region
              $region90: #{tpu_custom_call.1} parent=77 // pred_check
                _
              $region91: #{tpu_custom_call.1} parent=77 // pred_check_branch
                %370 = sbr.rel (0) target = $region93
              $region92: #{tpu_custom_call.1} parent=77 // pred_region
                loop: start=0, step=1, limit=1
                $region94: #{tpu_custom_call.1} parent=92 // loop_pre_header
                  _
                $region95: #{tpu_custom_call.1} parent=92 // loop_header
                  %s372 = sphi 0, %s376
                  %p373 = scmp.ge.s32.totalorder %s372, 1
                  %s377 = sphi %s344, %s344
                  %s378 = sphi %s342, %s342
                $region96: #{tpu_custom_call.1} parent=92 // loop_header_branch
                  %375 = sbr.rel (%p373) target = $region100
                $region97: #{tpu_custom_call.1} parent=92 // loop_body
                  %v379 = vld [vmem:[%s377] sm:$0xff]
                  %380 = vst [vmem:[%s378] sm:$0xff] %v379
                  %v381 = vld [vmem:[%s377 + $0x10] sm:$0xff]
                  %382 = vst [vmem:[%s378 + $0x8] sm:$0xff] %v381
                  %v383 = vld [vmem:[%s377 + $0x20] sm:$0xff]
                  %384 = vst [vmem:[%s378 + $0x10] sm:$0xff] %v383
                  %v385 = vld [vmem:[%s377 + $0x30] sm:$0xff]
                  %386 = vst [vmem:[%s378 + $0x18] sm:$0xff] %v385
                $region98: #{tpu_custom_call.1} parent=92 // loop_footer
                  %s376 = sadd.s32 1, %s372
                $region99: #{tpu_custom_call.1} parent=92 // loop_footer_branch
                  %371 = sbr.rel target = $region95
                $region100: #{tpu_custom_call.1} parent=92 // loop_exit
                  _
              $region93: #{tpu_custom_call.1} parent=77 // pred_fallthru
                _
              // Predicated region
              $region101: #{tpu_custom_call.1} parent=77 // pred_check
                _
              $region102: #{tpu_custom_call.1} parent=77 // pred_check_branch
                %388 = sbr.rel target = $region104
              $region103: #{tpu_custom_call.1} parent=77 // pred_region
                _
              $region104: #{tpu_custom_call.1} parent=77 // pred_fallthru
                _
            $region78: #{tpu_custom_call.1} parent=73 // pred_fallthru
              _
            // Predicated region
            $region79: #{tpu_custom_call.1} parent=73 // pred_check
              _
            $region80: #{tpu_custom_call.1} parent=73 // pred_check_branch
              %350 = sbr.rel target = $region82
            $region81: #{tpu_custom_call.1} parent=73 // pred_region
              %s352 = ssub.s32 256, 1
              loop: start=0, step=1, limit=1
              $region83: #{tpu_custom_call.1} parent=81 // loop_pre_header
                _
              $region84: #{tpu_custom_call.1} parent=81 // loop_header
                %s354 = sphi 0, %s358
                %p355 = scmp.ge.s32.totalorder %s354, 1
                %s359 = sphi %s344, %s344
                %s360 = sphi %s342, %s342
              $region85: #{tpu_custom_call.1} parent=81 // loop_header_branch
                %357 = sbr.rel (%p355) target = $region89
              $region86: #{tpu_custom_call.1} parent=81 // loop_body
                %v361 = vld [vmem:[%s359] sm:%s352]
                %362 = vst [vmem:[%s360] sm:%s352] %v361
                %v363 = vld [vmem:[%s359 + $0x10] sm:%s352]
                %364 = vst [vmem:[%s360 + $0x8] sm:%s352] %v363
                %v365 = vld [vmem:[%s359 + $0x20] sm:%s352]
                %366 = vst [vmem:[%s360 + $0x10] sm:%s352] %v365
                %v367 = vld [vmem:[%s359 + $0x30] sm:%s352]
                %368 = vst [vmem:[%s360 + $0x18] sm:%s352] %v367
              $region87: #{tpu_custom_call.1} parent=81 // loop_footer
                %s358 = sadd.s32 1, %s354
              $region88: #{tpu_custom_call.1} parent=81 // loop_footer_branch
                %353 = sbr.rel target = $region84
              $region89: #{tpu_custom_call.1} parent=81 // loop_exit
                _
            $region82: #{tpu_custom_call.1} parent=73 // pred_fallthru
              _
          $region74: #{tpu_custom_call.1} parent=69 // pred_fallthru
            _
          %389 = vnop
        $region70: #{tpu_custom_call.1} parent=27 // pred_fallthru
          _
        // Predicated region
        $region105: #{tpu_custom_call.1} parent=27 // pred_check
          %p390 = pneg %p126
        $region106: #{tpu_custom_call.1} parent=27 // pred_check_branch
          %392 = sbr.rel (%p390) target = $region108
        $region107: #{tpu_custom_call.1} parent=27 // pred_region
          %p393 = scmp.lt.s32.totalorder %s23, 1
          %s394 = scalar_select %p393, %s23, 1
          %s395 = scalar_lea.vmem %s3, %s394
        $region108: #{tpu_custom_call.1} parent=27 // pred_fallthru
          _
        // Predicated region
        $region109: #{tpu_custom_call.1} parent=27 // pred_check
          %p396 = pneg %p178
        $region110: #{tpu_custom_call.1} parent=27 // pred_check_branch
          %398 = sbr.rel (%p396) target = $region112
        $region111: #{tpu_custom_call.1} parent=27 // pred_region
          %p399 = scmp.lt.s32.totalorder %s23, 1
          %s400 = scalar_select %p399, %s23, 1
          %s401 = scalar_lea.vmem %s5, %s400
        $region112: #{tpu_custom_call.1} parent=27 // pred_fallthru
          _
      $region28: #{tpu_custom_call.1} parent=5 // pred_fallthru
        _
      %p402 = scmp.le.s32.totalorder 1, %s16
      %p403 = scmp.lt.s32.totalorder %s16, 3
      %p404 = pnand %p402, %p403
      %p405 = pneg %p404
      // Predicated region
      $region113: #{tpu_custom_call.1} parent=5 // pred_check
        _
      $region114: #{tpu_custom_call.1} parent=5 // pred_check_branch
        %407 = sbr.rel (%p404) target = $region116
      $region115: #{tpu_custom_call.1} parent=5 // pred_region
        %s408 = ssub.s32 %s16, 1
        %s409 = sand.u32 %s41, 1
        %s410 = sand.u32 %s41, 1
        %s411 = smul.addr %s410, 32
        %s412 = scalar_lea.vmem [#allocation5], %s411
        // Predicated region
        $region117: #{tpu_custom_call.1} parent=115 // pred_check
          %p413 = pneg %p54
        $region118: #{tpu_custom_call.1} parent=115 // pred_check_branch
          %415 = sbr.rel (%p413) target = $region120
        $region119: #{tpu_custom_call.1} parent=115 // pred_region
          _
        $region120: #{tpu_custom_call.1} parent=115 // pred_fallthru
          _
        %s416 = sand.u32 %s67, 1
        %s417 = sand.u32 %s67, 1
        %s418 = smul.addr %s417, 32
        %s419 = scalar_lea.vmem [#allocation6], %s418
        // Predicated region
        $region121: #{tpu_custom_call.1} parent=115 // pred_check
          %p420 = pneg %p80
        $region122: #{tpu_custom_call.1} parent=115 // pred_check_branch
          %422 = sbr.rel (%p420) target = $region124
        $region123: #{tpu_custom_call.1} parent=115 // pred_region
          _
        $region124: #{tpu_custom_call.1} parent=115 // pred_fallthru
          _
        %s423 = sand.u32 %s41, 1
        %s424 = sand.u32 %s41, 1
        %s425 = smul.addr %s424, 32
        %s426 = scalar_lea.vmem [#allocation5], %s425
        %p427 = pneg %p54
        %p428 = pneg %p51
        %s429 = sand.u32 %s67, 1
        %s430 = sand.u32 %s67, 1
        %s431 = smul.addr %s430, 32
        %s432 = scalar_lea.vmem [#allocation6], %s431
        %p433 = pneg %p80
        %p434 = pneg %p77
        %s435 = smul.u32 16, %s26
        %p436 = scmp.lt.s32.totalorder %s435, 15
        %s437 = scalar_select %p436, %s435, 15
        %s438 = smul.addr %s437, 8
        %s439 = scalar_lea.vmem %s2, %s438
        %p440 = pneg %p106
        %p441 = pneg %p103
        %p442 = scmp.lt.s32.totalorder %s25, 1
        %s443 = scalar_select %p442, %s25, 1
        %s444 = scalar_lea.vmem %s3, %s443
        %p445 = pneg %p132
        %p446 = pneg %p129
        %s447 = smul.u32 16, %s26
        %p448 = scmp.lt.s32.totalorder %s447, 15
        %s449 = scalar_select %p448, %s447, 15
        %s450 = smul.addr %s449, 8
        %s451 = scalar_lea.vmem %s4, %s450
        %p452 = pneg %p158
        %p453 = pneg %p155
        %p454 = scmp.lt.s32.totalorder %s25, 1
        %s455 = scalar_select %p454, %s25, 1
        %s456 = scalar_lea.vmem %s5, %s455
        %p457 = pneg %p184
        %p458 = pneg %p181
        %s459 = smul.u32 16, %s26
        %p460 = scmp.lt.s32.totalorder %s459, 15
        %s461 = scalar_select %p460, %s459, 15
        %s462 = smul.addr %s461, 8
        %s463 = scalar_lea.vmem %s6, %s462
        %p464 = pneg %p210
        %p465 = pneg %p207
        %p466 = pneg %p236
        %p467 = pneg %p233
        %s468 = sand.u32 %s223, 1
        %s469 = scalar_lea.sflag [#allocation8], %s468
        %s470 = sand.u32 %s223, 1
        %s471 = scalar_lea.vmem [#allocation7], %s470
        %s472 = smul.u32 16, %s26
        %p473 = scmp.lt.s32.totalorder %s472, 15
        %s474 = scalar_select %p473, %s472, 15
        %s475 = smul.addr %s474, 8
        %s476 = scalar_lea.vmem %s2, %s475
        %s477 = smul.u32 16, %s26
        %p478 = scmp.lt.s32.totalorder %s25, 1
        %s479 = scalar_select %p478, %s25, 1
        %s480 = scalar_lea.vmem %s3, %s479
        %s481 = smul.u32 16, %s26
        %p482 = scmp.lt.s32.totalorder %s481, 15
        %s483 = scalar_select %p482, %s481, 15
        %s484 = smul.addr %s483, 8
        %s485 = scalar_lea.vmem %s4, %s484
        %s486 = smul.u32 16, %s26
        %p487 = scmp.lt.s32.totalorder %s25, 1
        %s488 = scalar_select %p487, %s25, 1
        %s489 = scalar_lea.vmem %s5, %s488
        %s490 = smul.u32 16, %s26
        %p491 = scmp.lt.s32.totalorder %s490, 15
        %s492 = scalar_select %p491, %s490, 15
        %s493 = smul.addr %s492, 8
        %s494 = scalar_lea.vmem %s6, %s493
        %s495 = smul.u32 16, %s26
        %v496 = vld [vmem:[%s412] sm:$0xff]
        %v497 = vld [vmem:[%s412 + $0x8] sm:$0xff]
        %v498 = vld [vmem:[%s412 + $0x10] sm:$0xff]
        %v499 = vld [vmem:[%s412 + $0x18] sm:$0xff]
        %v500 = vmul.f32 %v496, 10.0
        %v501 = vmul.f32 %v497, 10.0
        %v502 = vmul.f32 %v498, 10.0
        %v503 = vmul.f32 %v499, 10.0
        %p504 = scmp.eq.s32.totalorder %s26, 0
        // Predicated region
        $region125: #{tpu_custom_call.1} parent=115 // pred_check
          %p505 = pneg %p504
        $region126: #{tpu_custom_call.1} parent=115 // pred_check_branch
          %507 = sbr.rel (%p505) target = $region128
        $region127: #{tpu_custom_call.1} parent=115 // pred_region
          %v508 = vld [vmem:[%s419] sm:$0xff]
          %v509 = vld [vmem:[%s419 + $0x8] sm:$0xff]
          %v510 = vld [vmem:[%s419 + $0x10] sm:$0xff]
          %v511 = vld [vmem:[%s419 + $0x18] sm:$0xff]
          %v512 = vmul.f32 %v500, %v508
          %v513 = vmul.f32 %v501, %v509
          %v514 = vmul.f32 %v502, %v510
          %v515 = vmul.f32 %v503, %v511
          %v516 = vadd.f32 %v512, %v513
          %v517 = vadd.f32 %v516, %v514
          %v518 = vadd.f32 %v517, %v515
          %v519 = vrot.slane %v518, 4
          %v520 = vadd.f32 %v518, %v519
          %v521 = vrot.slane %v520, 2
          %v522 = vadd.f32 %v520, %v521
          %v523 = vrot.slane %v522, 1
          %v524 = vadd.f32 %v522, %v523
          %525 = vst [vmem:[#allocation2] sm:$0x1] %v524
          %526 = vst [vmem:[#allocation3] sm:$0x1] %v524
          %527 = vst [vmem:[#allocation4] sm:$0x1] 1.0
        $region128: #{tpu_custom_call.1} parent=115 // pred_fallthru
          _
        %v528 = vld [vmem:[%s476] sm:$0xff]
        %v529 = vld [vmem:[%s476 + $0x8] sm:$0xff]
        %v530 = vld [vmem:[%s476 + $0x10] sm:$0xff]
        %v531 = vld [vmem:[%s476 + $0x18] sm:$0xff]
        %v532 = vld [vmem:[%s476 + $0x20] sm:$0xff]
        %v533 = vld [vmem:[%s476 + $0x28] sm:$0xff]
        %v534 = vld [vmem:[%s476 + $0x30] sm:$0xff]
        %v535 = vld [vmem:[%s476 + $0x38] sm:$0xff]
        %v536 = vld [vmem:[%s476 + $0x40] sm:$0xff]
        %v537 = vld [vmem:[%s476 + $0x48] sm:$0xff]
        %v538 = vld [vmem:[%s476 + $0x50] sm:$0xff]
        %v539 = vld [vmem:[%s476 + $0x58] sm:$0xff]
        %v540 = vld [vmem:[%s476 + $0x60] sm:$0xff]
        %v541 = vld [vmem:[%s476 + $0x68] sm:$0xff]
        %v542 = vld [vmem:[%s476 + $0x70] sm:$0xff]
        %v543 = vld [vmem:[%s476 + $0x78] sm:$0xff]
        %vm544 = vcmask 261120
        %v546 = vsel %vm544, %v528, 0
        %v549 = vsel %vm544, %v529, 0
        %v552 = vsel %vm544, %v530, 0
        %v555 = vsel %vm544, %v531, 0
        %v558 = vsel %vm544, %v532, 0
        %v561 = vsel %vm544, %v533, 0
        %v564 = vsel %vm544, %v534, 0
        %v567 = vsel %vm544, %v535, 0
        %v570 = vsel %vm544, %v536, 0
        %v573 = vsel %vm544, %v537, 0
        %v576 = vsel %vm544, %v538, 0
        %v579 = vsel %vm544, %v539, 0
        %v582 = vsel %vm544, %v540, 0
        %v585 = vsel %vm544, %v541, 0
        %v588 = vsel %vm544, %v542, 0
        %v591 = vsel %vm544, %v543, 0
        %593 = vmatprep.subr.mxu0 0.0
        %594 = vmatpush1.msra.mxu0 0.0
        %595 = vmatprep.subr.mxu0 0.0
        %596 = vmatpush1.msra.mxu0 0.0
        %597 = vmatprep.subr.mxu0 0.0
        %598 = vmatpush1.msra.mxu0 0.0
        %599 = vmatprep.subr.mxu0 0.0
        %600 = vmatpush1.msra.mxu0 0.0
        %601 = vmatprep.subr.mxu0 0.0
        %602 = vmatpush1.msra.mxu0 0.0
        %603 = vmatprep.subr.mxu0 0.0
        %604 = vmatpush1.msra.mxu0 0.0
        %605 = vmatprep.subr.mxu0 0.0
        %606 = vmatpush1.msra.mxu0 0.0
        %607 = vmatprep.subr.mxu0 0.0
        %608 = vmatpush1.msra.mxu0 0.0
        %609 = vmatprep.subr.mxu0 0.0
        %610 = vmatpush1.msra.mxu0 0.0
        %611 = vmatprep.subr.mxu0 0.0
        %612 = vmatpush1.msra.mxu0 0.0
        %613 = vmatprep.subr.mxu0 0.0
        %614 = vmatpush1.msra.mxu0 0.0
        %615 = vmatprep.subr.mxu0 0.0
        %616 = vmatpush1.msra.mxu0 0.0
        %617 = vmatprep.subr.mxu0 0.0
        %618 = vmatpush1.msra.mxu0 %v503
        %619 = vmatprep.subr.mxu0 0.0
        %620 = vmatpush1.msra.mxu0 %v502
        %621 = vmatprep.subr.mxu0 0.0
        %622 = vmatpush1.msra.mxu0 %v501
        %623 = vmatprep.subr.mxu0 0.0
        %624 = vmatpush1.msra.mxu0 %v500
        %625 = vmatprep.subr.mxu0 0.0
        %626 = vmatpush2.msra.mxu0 0.0
        %627 = vmatprep.subr.mxu0 0.0
        %628 = vmatpush2.msra.mxu0 0.0
        %629 = vmatprep.subr.mxu0 0.0
        %630 = vmatpush2.msra.mxu0 0.0
        %631 = vmatprep.subr.mxu0 0.0
        %632 = vmatpush2.msra.mxu0 0.0
        %633 = vmatprep.subr.mxu0 0.0
        %634 = vmatpush2.msra.mxu0 0.0
        %635 = vmatprep.subr.mxu0 0.0
        %636 = vmatpush2.msra.mxu0 0.0
        %637 = vmatprep.subr.mxu0 0.0
        %638 = vmatpush2.msra.mxu0 0.0
        %639 = vmatprep.subr.mxu0 0.0
        %640 = vmatpush2.msra.mxu0 0.0
        %641 = vmatprep.subr.mxu0 0.0
        %642 = vmatpush2.msra.mxu0 0.0
        %643 = vmatprep.subr.mxu0 0.0
        %644 = vmatpush2.msra.mxu0 0.0
        %645 = vmatprep.subr.mxu0 0.0
        %646 = vmatpush2.msra.mxu0 0.0
        %647 = vmatprep.subr.mxu0 0.0
        %648 = vmatpush2.msra.mxu0 0.0
        %649 = vmatprep.subr.mxu0 0.0
        %650 = vmatpush2.msra.mxu0 0.0
        %651 = vmatprep.subr.mxu0 0.0
        %652 = vmatpush2.msra.mxu0 0.0
        %653 = vmatprep.subr.mxu0 0.0
        %654 = vmatpush2.msra.mxu0 0.0
        %655 = vmatprep.subr.mxu0 0.0
        %656 = vmatpush2.msra.mxu0 0.0
        %657 = vmatprep.mubr.f32.mxu0 0.0
        %658 = vmatmul.mubr.f32.gmra.mxu0 %v546
        %v659 = vpop.f32.mrf.mxu0
        %v660 = vadd.f32 0.0, %v659
        %v661 = vpop.f32.mrf.mxu0
        %662 = vmatprep.mubr.f32.mxu0 0.0
        %663 = vmatmul.mubr.f32.gmra.mxu0 %v549
        %v664 = vpop.f32.mrf.mxu0
        %v665 = vadd.f32 0.0, %v664
        %v666 = vpop.f32.mrf.mxu0
        %667 = vmatprep.mubr.f32.mxu0 0.0
        %668 = vmatmul.mubr.f32.gmra.mxu0 %v552
        %v669 = vpop.f32.mrf.mxu0
        %v670 = vadd.f32 0.0, %v669
        %v671 = vpop.f32.mrf.mxu0
        %672 = vmatprep.mubr.f32.mxu0 0.0
        %673 = vmatmul.mubr.f32.gmra.mxu0 %v555
        %v674 = vpop.f32.mrf.mxu0
        %v675 = vadd.f32 0.0, %v674
        %v676 = vpop.f32.mrf.mxu0
        %677 = vmatprep.mubr.f32.mxu0 0.0
        %678 = vmatmul.mubr.f32.gmra.mxu0 %v558
        %v679 = vpop.f32.mrf.mxu0
        %v680 = vadd.f32 0.0, %v679
        %v681 = vpop.f32.mrf.mxu0
        %682 = vmatprep.mubr.f32.mxu0 0.0
        %683 = vmatmul.mubr.f32.gmra.mxu0 %v561
        %v684 = vpop.f32.mrf.mxu0
        %v685 = vadd.f32 0.0, %v684
        %v686 = vpop.f32.mrf.mxu0
        %687 = vmatprep.mubr.f32.mxu0 0.0
        %688 = vmatmul.mubr.f32.gmra.mxu0 %v564
        %v689 = vpop.f32.mrf.mxu0
        %v690 = vadd.f32 0.0, %v689
        %v691 = vpop.f32.mrf.mxu0
        %692 = vmatprep.mubr.f32.mxu0 0.0
        %693 = vmatmul.mubr.f32.gmra.mxu0 %v567
        %v694 = vpop.f32.mrf.mxu0
        %v695 = vadd.f32 0.0, %v694
        %v696 = vpop.f32.mrf.mxu0
        %697 = vmatprep.mubr.f32.mxu0 0.0
        %698 = vmatmul.mubr.f32.gmra.mxu0 %v570
        %v699 = vpop.f32.mrf.mxu0
        %v700 = vadd.f32 0.0, %v699
        %v701 = vpop.f32.mrf.mxu0
        %702 = vmatprep.mubr.f32.mxu0 0.0
        %703 = vmatmul.mubr.f32.gmra.mxu0 %v573
        %v704 = vpop.f32.mrf.mxu0
        %v705 = vadd.f32 0.0, %v704
        %v706 = vpop.f32.mrf.mxu0
        %707 = vmatprep.mubr.f32.mxu0 0.0
        %708 = vmatmul.mubr.f32.gmra.mxu0 %v576
        %v709 = vpop.f32.mrf.mxu0
        %v710 = vadd.f32 0.0, %v709
        %v711 = vpop.f32.mrf.mxu0
        %712 = vmatprep.mubr.f32.mxu0 0.0
        %713 = vmatmul.mubr.f32.gmra.mxu0 %v579
        %v714 = vpop.f32.mrf.mxu0
        %v715 = vadd.f32 0.0, %v714
        %v716 = vpop.f32.mrf.mxu0
        %717 = vmatprep.mubr.f32.mxu0 0.0
        %718 = vmatmul.mubr.f32.gmra.mxu0 %v582
        %v719 = vpop.f32.mrf.mxu0
        %v720 = vadd.f32 0.0, %v719
        %v721 = vpop.f32.mrf.mxu0
        %722 = vmatprep.mubr.f32.mxu0 0.0
        %723 = vmatmul.mubr.f32.gmra.mxu0 %v585
        %v724 = vpop.f32.mrf.mxu0
        %v725 = vadd.f32 0.0, %v724
        %v726 = vpop.f32.mrf.mxu0
        %727 = vmatprep.mubr.f32.mxu0 0.0
        %728 = vmatmul.mubr.f32.gmra.mxu0 %v588
        %v729 = vpop.f32.mrf.mxu0
        %v730 = vadd.f32 0.0, %v729
        %v731 = vpop.f32.mrf.mxu0
        %732 = vmatprep.mubr.f32.mxu0 0.0
        %733 = vmatmul.mubr.f32.gmra.mxu0 %v591
        %v734 = vpop.f32.mrf.mxu0
        %v735 = vadd.f32 0.0, %v734
        %v736 = vpop.f32.mrf.mxu0
        %737 = vdwg.mxu0
        %v738 = vld [vmem:[#allocation3] sm:$0x1]
        %v739 = vmax.f32 %v660, %v680
        %v740 = vmax.f32 %v665, %v685
        %v741 = vmax.f32 %v670, %v690
        %v742 = vmax.f32 %v675, %v695
        %v743 = vmax.f32 %v739, %v700
        %v744 = vmax.f32 %v740, %v705
        %v745 = vmax.f32 %v741, %v710
        %v746 = vmax.f32 %v742, %v715
        %v747 = vmax.f32 %v743, %v720
        %v748 = vmax.f32 %v744, %v725
        %v749 = vmax.f32 %v745, %v730
        %v750 = vmax.f32 %v746, %v735
        %v751 = vmax.f32 %v747, %v748
        %v752 = vmax.f32 %v749, %v750
        %v753 = vmax.f32 %v751, %v752
        %v754 = vrot.slane %v753, 4
        %v755 = vmax.f32 %v753, %v754
        %v756 = vrot.slane %v755, 2
        %v757 = vmax.f32 %v755, %v756
        %v758 = vrot.slane %v757, 1
        %v759 = vmax.f32 %v757, %v758
        %v760 = vmax.f32 %v738, %v759
        %v761 = vld [vmem:[%s485] sm:$0xff]
        %v762 = vld [vmem:[%s485 + $0x8] sm:$0xff]
        %v763 = vld [vmem:[%s485 + $0x10] sm:$0xff]
        %v764 = vld [vmem:[%s485 + $0x18] sm:$0xff]
        %v765 = vld [vmem:[%s485 + $0x20] sm:$0xff]
        %v766 = vld [vmem:[%s485 + $0x28] sm:$0xff]
        %v767 = vld [vmem:[%s485 + $0x30] sm:$0xff]
        %v768 = vld [vmem:[%s485 + $0x38] sm:$0xff]
        %v769 = vld [vmem:[%s485 + $0x40] sm:$0xff]
        %v770 = vld [vmem:[%s485 + $0x48] sm:$0xff]
        %v771 = vld [vmem:[%s485 + $0x50] sm:$0xff]
        %v772 = vld [vmem:[%s485 + $0x58] sm:$0xff]
        %v773 = vld [vmem:[%s485 + $0x60] sm:$0xff]
        %v774 = vld [vmem:[%s485 + $0x68] sm:$0xff]
        %v775 = vld [vmem:[%s485 + $0x70] sm:$0xff]
        %v776 = vld [vmem:[%s485 + $0x78] sm:$0xff]
        %v777 = vld [vmem:[%s480] sm:$0x1]
        %778 = vset.pattern.permute.xlu0 0
        %779 = vperm.xlu0 %778, %v761
        %v780 = vpop.permute.xlu0 %779
        %781 = vset.pattern.permute.xlu0 0
        %782 = vperm.xlu0 %781, %v762
        %v783 = vpop.permute.xlu0 %782
        %784 = vset.pattern.permute.xlu0 0
        %785 = vperm.xlu0 %784, %v763
        %v786 = vpop.permute.xlu0 %785
        %787 = vset.pattern.permute.xlu0 0
        %788 = vperm.xlu0 %787, %v764
        %v789 = vpop.permute.xlu0 %788
        %790 = vset.pattern.permute.xlu0 0
        %791 = vperm.xlu0 %790, %v765
        %v792 = vpop.permute.xlu0 %791
        %793 = vset.pattern.permute.xlu0 0
        %794 = vperm.xlu0 %793, %v766
        %v795 = vpop.permute.xlu0 %794
        %796 = vset.pattern.permute.xlu0 0
        %797 = vperm.xlu0 %796, %v767
        %v798 = vpop.permute.xlu0 %797
        %799 = vset.pattern.permute.xlu0 0
        %800 = vperm.xlu0 %799, %v768
        %v801 = vpop.permute.xlu0 %800
        %802 = vset.pattern.permute.xlu0 0
        %803 = vperm.xlu0 %802, %v769
        %v804 = vpop.permute.xlu0 %803
        %805 = vset.pattern.permute.xlu0 0
        %806 = vperm.xlu0 %805, %v770
        %v807 = vpop.permute.xlu0 %806
        %808 = vset.pattern.permute.xlu0 0
        %809 = vperm.xlu0 %808, %v771
        %v810 = vpop.permute.xlu0 %809
        %811 = vset.pattern.permute.xlu0 0
        %812 = vperm.xlu0 %811, %v772
        %v813 = vpop.permute.xlu0 %812
        %814 = vset.pattern.permute.xlu0 0
        %815 = vperm.xlu0 %814, %v773
        %v816 = vpop.permute.xlu0 %815
        %817 = vset.pattern.permute.xlu0 0
        %818 = vperm.xlu0 %817, %v774
        %v819 = vpop.permute.xlu0 %818
        %820 = vset.pattern.permute.xlu0 0
        %821 = vperm.xlu0 %820, %v775
        %v822 = vpop.permute.xlu0 %821
        %823 = vset.pattern.permute.xlu0 0
        %824 = vperm.xlu0 %823, %v776
        %v825 = vpop.permute.xlu0 %824
        %v826 = vlaneseq
        %v827 = vshrl.u32 %v826, 7
        %v828 = vsub.s32 0, %v827
        %v829 = vrot.slane %v777, %v828
        %vm830 = vcmp.ne.s32.totalorder %v780, %v829
        %vm831 = vcmp.ne.s32.totalorder %v783, %v829
        %vm832 = vcmp.ne.s32.totalorder %v786, %v829
        %vm833 = vcmp.ne.s32.totalorder %v789, %v829
        %vm834 = vcmp.ne.s32.totalorder %v792, %v829
        %vm835 = vcmp.ne.s32.totalorder %v795, %v829
        %vm836 = vcmp.ne.s32.totalorder %v798, %v829
        %vm837 = vcmp.ne.s32.totalorder %v801, %v829
        %vm838 = vcmp.ne.s32.totalorder %v804, %v829
        %vm839 = vcmp.ne.s32.totalorder %v807, %v829
        %vm840 = vcmp.ne.s32.totalorder %v810, %v829
        %vm841 = vcmp.ne.s32.totalorder %v813, %v829
        %vm842 = vcmp.ne.s32.totalorder %v816, %v829
        %vm843 = vcmp.ne.s32.totalorder %v819, %v829
        %vm844 = vcmp.ne.s32.totalorder %v822, %v829
        %vm845 = vcmp.ne.s32.totalorder %v825, %v829
        %v846 = vld [vmem:[%s494] sm:$0xff]
        %v847 = vld [vmem:[%s494 + $0x8] sm:$0xff]
        %v848 = vld [vmem:[%s494 + $0x10] sm:$0xff]
        %v849 = vld [vmem:[%s494 + $0x18] sm:$0xff]
        %v850 = vld [vmem:[%s494 + $0x20] sm:$0xff]
        %v851 = vld [vmem:[%s494 + $0x28] sm:$0xff]
        %v852 = vld [vmem:[%s494 + $0x30] sm:$0xff]
        %v853 = vld [vmem:[%s494 + $0x38] sm:$0xff]
        %v854 = vld [vmem:[%s494 + $0x40] sm:$0xff]
        %v855 = vld [vmem:[%s494 + $0x48] sm:$0xff]
        %v856 = vld [vmem:[%s494 + $0x50] sm:$0xff]
        %v857 = vld [vmem:[%s494 + $0x58] sm:$0xff]
        %v858 = vld [vmem:[%s494 + $0x60] sm:$0xff]
        %v859 = vld [vmem:[%s494 + $0x68] sm:$0xff]
        %v860 = vld [vmem:[%s494 + $0x70] sm:$0xff]
        %v861 = vld [vmem:[%s494 + $0x78] sm:$0xff]
        %v862 = vld [vmem:[%s489] sm:$0x1]
        %864 = vset.pattern.permute.xlu0 0
        %865 = vperm.xlu0 %864, %v846
        %v866 = vpop.permute.xlu0 %865
        %869 = vset.pattern.permute.xlu0 0
        %870 = vperm.xlu0 %869, %v847
        %v871 = vpop.permute.xlu0 %870
        %874 = vset.pattern.permute.xlu0 0
        %875 = vperm.xlu0 %874, %v848
        %v876 = vpop.permute.xlu0 %875
        %879 = vset.pattern.permute.xlu0 0
        %880 = vperm.xlu0 %879, %v849
        %v881 = vpop.permute.xlu0 %880
        %884 = vset.pattern.permute.xlu0 0
        %885 = vperm.xlu0 %884, %v850
        %v886 = vpop.permute.xlu0 %885
        %889 = vset.pattern.permute.xlu0 0
        %890 = vperm.xlu0 %889, %v851
        %v891 = vpop.permute.xlu0 %890
        %894 = vset.pattern.permute.xlu0 0
        %895 = vperm.xlu0 %894, %v852
        %v896 = vpop.permute.xlu0 %895
        %899 = vset.pattern.permute.xlu0 0
        %900 = vperm.xlu0 %899, %v853
        %v901 = vpop.permute.xlu0 %900
        %904 = vset.pattern.permute.xlu0 0
        %905 = vperm.xlu0 %904, %v854
        %v906 = vpop.permute.xlu0 %905
        %909 = vset.pattern.permute.xlu0 0
        %910 = vperm.xlu0 %909, %v855
        %v911 = vpop.permute.xlu0 %910
        %914 = vset.pattern.permute.xlu0 0
        %915 = vperm.xlu0 %914, %v856
        %v916 = vpop.permute.xlu0 %915
        %919 = vset.pattern.permute.xlu0 0
        %920 = vperm.xlu0 %919, %v857
        %v921 = vpop.permute.xlu0 %920
        %924 = vset.pattern.permute.xlu0 0
        %925 = vperm.xlu0 %924, %v858
        %v926 = vpop.permute.xlu0 %925
        %929 = vset.pattern.permute.xlu0 0
        %930 = vperm.xlu0 %929, %v859
        %v931 = vpop.permute.xlu0 %930
        %934 = vset.pattern.permute.xlu0 0
        %935 = vperm.xlu0 %934, %v860
        %v936 = vpop.permute.xlu0 %935
        %939 = vset.pattern.permute.xlu0 0
        %940 = vperm.xlu0 %939, %v861
        %v941 = vpop.permute.xlu0 %940
        %v944 = vlaneseq
        %v945 = vshrl.u32 %v944, 7
        %v946 = vsub.s32 0, %v945
        %v947 = vrot.slane %v862, %v946
        %vm949 = vcmp.le.f32.partialorder %v866, %v947
        %vm950 = vcmp.le.f32.partialorder %v871, %v947
        %vm951 = vcmp.le.f32.partialorder %v876, %v947
        %vm952 = vcmp.le.f32.partialorder %v881, %v947
        %vm953 = vcmp.le.f32.partialorder %v886, %v947
        %vm954 = vcmp.le.f32.partialorder %v891, %v947
        %vm955 = vcmp.le.f32.partialorder %v896, %v947
        %vm956 = vcmp.le.f32.partialorder %v901, %v947
        %vm957 = vcmp.le.f32.partialorder %v906, %v947
        %vm958 = vcmp.le.f32.partialorder %v911, %v947
        %vm959 = vcmp.le.f32.partialorder %v916, %v947
        %vm960 = vcmp.le.f32.partialorder %v921, %v947
        %vm961 = vcmp.le.f32.partialorder %v926, %v947
        %vm962 = vcmp.le.f32.partialorder %v931, %v947
        %vm963 = vcmp.le.f32.partialorder %v936, %v947
        %vm964 = vcmp.le.f32.partialorder %v941, %v947
        %vm965 = vmand %vm830, %vm949
        %vm966 = vmand %vm831, %vm950
        %vm967 = vmand %vm832, %vm951
        %vm968 = vmand %vm833, %vm952
        %vm969 = vmand %vm834, %vm953
        %vm970 = vmand %vm835, %vm954
        %vm971 = vmand %vm836, %vm955
        %vm972 = vmand %vm837, %vm956
        %vm973 = vmand %vm838, %vm957
        %vm974 = vmand %vm839, %vm958
        %vm975 = vmand %vm840, %vm959
        %vm976 = vmand %vm841, %vm960
        %vm977 = vmand %vm842, %vm961
        %vm978 = vmand %vm843, %vm962
        %vm979 = vmand %vm844, %vm963
        %vm980 = vmand %vm845, %vm964
        %v982 = vlaneseq
        %v983 = vshrl.u32 %v982, 7
        %v984 = vsub.s32 0, %v983
        %v985 = vrot.slane %v760, %v984
        %v987 = vsub.f32 %v660, %v985
        %v988 = vsub.f32 %v665, %v985
        %v989 = vsub.f32 %v670, %v985
        %v990 = vsub.f32 %v675, %v985
        %v991 = vsub.f32 %v680, %v985
        %v992 = vsub.f32 %v685, %v985
        %v993 = vsub.f32 %v690, %v985
        %v994 = vsub.f32 %v695, %v985
        %v995 = vsub.f32 %v700, %v985
        %v996 = vsub.f32 %v705, %v985
        %v997 = vsub.f32 %v710, %v985
        %v998 = vsub.f32 %v715, %v985
        %v999 = vsub.f32 %v720, %v985
        %v1000 = vsub.f32 %v725, %v985
        %v1001 = vsub.f32 %v730, %v985
        %v1002 = vsub.f32 %v735, %v985
        %v1003 = vmul.f32 %v987, 1.442695
        %v1004 = vpow.pop %v1003
        %v1005 = vmul.f32 %v988, 1.442695
        %v1006 = vpow.pop %v1005
        %v1007 = vmul.f32 %v989, 1.442695
        %v1008 = vpow.pop %v1007
        %v1009 = vmul.f32 %v990, 1.442695
        %v1010 = vpow.pop %v1009
        %v1011 = vmul.f32 %v991, 1.442695
        %v1012 = vpow.pop %v1011
        %v1013 = vmul.f32 %v992, 1.442695
        %v1014 = vpow.pop %v1013
        %v1015 = vmul.f32 %v993, 1.442695
        %v1016 = vpow.pop %v1015
        %v1017 = vmul.f32 %v994, 1.442695
        %v1018 = vpow.pop %v1017
        %v1019 = vmul.f32 %v995, 1.442695
        %v1020 = vpow.pop %v1019
        %v1021 = vmul.f32 %v996, 1.442695
        %v1022 = vpow.pop %v1021
        %v1023 = vmul.f32 %v997, 1.442695
        %v1024 = vpow.pop %v1023
        %v1025 = vmul.f32 %v998, 1.442695
        %v1026 = vpow.pop %v1025
        %v1027 = vmul.f32 %v999, 1.442695
        %v1028 = vpow.pop %v1027
        %v1029 = vmul.f32 %v1000, 1.442695
        %v1030 = vpow.pop %v1029
        %v1031 = vmul.f32 %v1001, 1.442695
        %v1032 = vpow.pop %v1031
        %v1033 = vmul.f32 %v1002, 1.442695
        %v1034 = vpow.pop %v1033
        %v1035 = vsel %vm965, %v1004, 0.0
        %v1036 = vsel %vm966, %v1006, 0.0
        %v1037 = vsel %vm967, %v1008, 0.0
        %v1038 = vsel %vm968, %v1010, 0.0
        %v1039 = vsel %vm969, %v1012, 0.0
        %v1040 = vsel %vm970, %v1014, 0.0
        %v1041 = vsel %vm971, %v1016, 0.0
        %v1042 = vsel %vm972, %v1018, 0.0
        %v1043 = vsel %vm973, %v1020, 0.0
        %v1044 = vsel %vm974, %v1022, 0.0
        %v1045 = vsel %vm975, %v1024, 0.0
        %v1046 = vsel %vm976, %v1026, 0.0
        %v1047 = vsel %vm977, %v1028, 0.0
        %v1048 = vsel %vm978, %v1030, 0.0
        %v1049 = vsel %vm979, %v1032, 0.0
        %v1050 = vsel %vm980, %v1034, 0.0
        %v1051 = vld [vmem:[#allocation4] sm:$0x1]
        %v1052 = vsub.f32 %v738, %v760
        %v1053 = vmul.f32 %v1052, 1.442695
        %v1054 = vpow.pop %v1053
        %v1055 = vmul.f32 %v1051, %v1054
        %v1056 = vadd.f32 %v1035, %v1036
        %v1057 = vadd.f32 %v1056, %v1037
        %v1058 = vadd.f32 %v1057, %v1038
        %v1059 = vadd.f32 %v1058, %v1039
        %v1060 = vadd.f32 %v1059, %v1040
        %v1061 = vadd.f32 %v1060, %v1041
        %v1062 = vadd.f32 %v1061, %v1042
        %v1063 = vadd.f32 %v1062, %v1043
        %v1064 = vadd.f32 %v1063, %v1044
        %v1065 = vadd.f32 %v1064, %v1045
        %v1066 = vadd.f32 %v1065, %v1046
        %v1067 = vadd.f32 %v1066, %v1047
        %v1068 = vadd.f32 %v1067, %v1048
        %v1069 = vadd.f32 %v1068, %v1049
        %v1070 = vadd.f32 %v1069, %v1050
        %v1071 = vrot.slane %v1070, 4
        %v1072 = vadd.f32 %v1070, %v1071
        %v1073 = vrot.slane %v1072, 2
        %v1074 = vadd.f32 %v1072, %v1073
        %v1075 = vrot.slane %v1074, 1
        %v1076 = vadd.f32 %v1074, %v1075
        %v1077 = vadd.f32 %v1055, %v1076
        %1078 = vst [vmem:[#allocation4] sm:$0x1] %v1077
        %1079 = vst [vmem:[#allocation3] sm:$0x1] %v760
        // Predicated region
        $region129: #{tpu_custom_call.1} parent=115 // pred_check
          %p1080 = pneg %p504
        $region130: #{tpu_custom_call.1} parent=115 // pred_check_branch
          %1082 = sbr.rel (%p1080) target = $region132
        $region131: #{tpu_custom_call.1} parent=115 // pred_region
          %v1083 = vld [vmem:[#allocation2] sm:$0x1]
          %v1084 = vld [vmem:[#allocation3] sm:$0x1]
          %v1085 = vsub.f32 %v1083, %v1084
          %v1086 = vmul.f32 %v1085, 1.442695
          %v1087 = vpow.pop %v1086
          %v1088 = vld [vmem:[#allocation4] sm:$0x1]
          %v1089 = vadd.f32 %v1088, 1e-08
          %v1090 = vrcp.pop %v1089
          %v1091 = vmul.f32 %v1087, %v1090
          %v1092 = vadd.f32 %v1091, 1e-08
          %v1093 = vlog2.pop %v1092
          %v1094 = vmul.f32 %v1093, 0.6931472
          %v1095 = vsub.f32 0.0, %v1094
          %1096 = vst [vmem:[%s471] sm:$0x1] %v1095
        $region132: #{tpu_custom_call.1} parent=115 // pred_fallthru
          _
        %s1097 = sand.u32 %s223, 1
        %s1098 = scalar_lea.sflag [#allocation8], %s1097
        %s1099 = sand.u32 %s223, 1
        %s1100 = scalar_lea.vmem [#allocation7], %s1099
        // Predicated region
        $region133: #{tpu_custom_call.1} parent=115 // pred_check
          %p1101 = pneg %p233
        $region134: #{tpu_custom_call.1} parent=115 // pred_check_branch
          %1103 = sbr.rel (%p1101) target = $region136
        $region135: #{tpu_custom_call.1} parent=115 // pred_region
          %s1105 = ssub.s32 16, 16
          %1106 = vsyncadd %s1098, %s1105
          %s1107 = smul.addr %s25, 16
          %s1108 = scalar_lea.hbm %s7, %s1107
          %s1110 = sshll.u32 %s1100, 4
          %s1111 = int_to_ptr.vmem [resolvable:$true] %s1110
          %1113 = dma.vmem_to_hbm [thread:$0]  %s1111, 16, %s1108, %s1098
        $region136: #{tpu_custom_call.1} parent=115 // pred_fallthru
          _
      $region116: #{tpu_custom_call.1} parent=5 // pred_fallthru
        _
      %p1114 = scmp.le.s32.totalorder 2, %s16
      // Predicated region
      $region137: #{tpu_custom_call.1} parent=5 // pred_check
        %p1115 = pneg %p1114
      $region138: #{tpu_custom_call.1} parent=5 // pred_check_branch
        %1117 = sbr.rel (%p1115) target = $region140
      $region139: #{tpu_custom_call.1} parent=5 // pred_region
        %s1118 = ssub.s32 %s16, 2
        // Predicated region
        $region141: #{tpu_custom_call.1} parent=139 // pred_check
          %p1119 = pneg %p239
        $region142: #{tpu_custom_call.1} parent=139 // pred_check_branch
          %1121 = sbr.rel (%p1119) target = $region144
        $region143: #{tpu_custom_call.1} parent=139 // pred_region
          %s1122 = sand.u32 %s224, 1
          %s1123 = scalar_lea.sflag [#allocation8], %s1122
          %s1124 = sand.u32 %s224, 1
          %s1125 = scalar_lea.vmem [#allocation7], %s1124
          %1126 = dma.done %s1123, 16
        $region144: #{tpu_custom_call.1} parent=139 // pred_fallthru
          _
      $region140: #{tpu_custom_call.1} parent=5 // pred_fallthru
        _
    $region6: #{tpu_custom_call.1} parent=1 // loop_footer
      %s20 = sadd.s32 1, %s16
    $region7: #{tpu_custom_call.1} parent=1 // loop_footer_branch
      %15 = sbr.rel target = $region3
    $region8: #{tpu_custom_call.1} parent=1 // loop_exit
      _
    %1127 = vsyncpa [#allocation8], 1
    %s1128 = scalar_lea.sflag [#allocation8], 1
    %1129 = vsyncpa %s1128, 1

</llo_original>
